<compile_context>
chip_gen: v7x
topology: tpu7x:2x2x1
jax: 0.10.0
libtpu: 0.0.40
codegen_flags: <defaults>
</compile_context>

<pallas_src>
import functools

import jax
import jax.numpy as jnp
from jax import lax
from jax.experimental import pallas as pl
from jax.experimental.pallas import tpu as pltpu


def _make_mha_kernel(d_k: float, has_mask: bool):
    inv_scale = 1.0 / (float(d_k) ** 0.5)

    def kernel(*refs):
        if has_mask:
            (q_ref, k_ref, v_ref, mask_ref,
             wq_ref, wk_ref, wv_ref, wo_ref, o_ref, acc_ref) = refs
        else:
            (q_ref, k_ref, v_ref,
             wq_ref, wk_ref, wv_ref, wo_ref, o_ref, acc_ref) = refs
            mask_ref = None

        h = pl.program_id(1)
        cdt = q_ref.dtype  # compute dtype for MXU operands (bf16 -> bf16 MXU rate)

        q = q_ref[0]        # (m, d_model)
        k = k_ref[0]        # (n, d_model)
        v = v_ref[0]        # (n, d_model)
        wq = wq_ref[0]      # (d_model, d_head)  -- this head's slice of Wq^T
        wk = wk_ref[0]      # (d_model, d_head)
        wv = wv_ref[0]      # (d_model, d_head)
        wo = wo_ref[0]      # (d_head, d_model)  -- this head's rows of Wo^T

        # Per-head projections (MXU, native-dtype operands, f32 accumulation).
        qh = jnp.dot(q, wq, preferred_element_type=jnp.float32)   # (m, d_head)
        kh = jnp.dot(k, wk, preferred_element_type=jnp.float32)   # (n, d_head)
        vh = jnp.dot(v, wv, preferred_element_type=jnp.float32)   # (n, d_head)

        # Fold 1/sqrt(d_k) into q: an m*d_head multiply instead of m*n.
        # (Equivalent to the reference: masked entries are -inf either way.)
        qh = (qh * inv_scale).astype(cdt)
        kh = kh.astype(cdt)

        # scores = qh @ kh^T without materializing a transpose of K.
        scores = lax.dot_general(qh, kh, (((1,), (1,)), ((), ())),
                                 preferred_element_type=jnp.float32)  # (m, n) f32

        if has_mask:
            scores = jnp.where(mask_ref[0] != 0, -jnp.inf, scores)

        # Numerically stable softmax, statistics in f32.
        row_max = jnp.max(scores, axis=-1, keepdims=True)
        e = jnp.exp(scores - row_max)
        denom = jnp.sum(e, axis=-1, keepdims=True)
        attn = e * pl.reciprocal(denom, approx=True)   # EUP slot, not VPU divide

        # ctx = attn @ v_h ; this head's contribution to the output projection.
        ctx = jnp.dot(attn.astype(cdt), vh.astype(cdt),
                      preferred_element_type=jnp.float32)             # (m, d_head)
        contrib = jnp.dot(ctx.astype(cdt), wo,
                          preferred_element_type=jnp.float32)         # (m, d_model)

        @pl.when(h == 0)
        def _():
            acc_ref[...] = jnp.zeros_like(acc_ref)

        acc_ref[...] += contrib

        @pl.when(h == pl.num_programs(1) - 1)
        def _():
            o_ref[0] = acc_ref[...].astype(o_ref.dtype)

    return kernel


def multi_head_attention(q, k, v, wq, wk, wv, wo, *, d_k, n_heads, mask=None):
    """Fused MultiHeadAttention forward.

    q: (B, m, d_model); k, v: (B, n, d_model); mask: (B, m, n) bool or None.
    wq/wk/wv/wo: (d_model, d_model) nn.Linear weights (y = x @ W.T, no bias).
    Returns (B, m, d_model) in q.dtype.
    """
    B, m, d_model = q.shape
    _, n, _ = k.shape
    assert d_model % n_heads == 0, "d_model must be divisible by n_heads"
    d_head = d_model // n_heads
    dt = q.dtype

    # nn.Linear computes x @ W.T; pre-transpose and split per head so each grid
    # step reads a full-extent (1, d_model, d_head) block (lane/sublane legal).
    wqT_h = jnp.transpose(wq.T.reshape(d_model, n_heads, d_head), (1, 0, 2)).astype(dt)
    wkT_h = jnp.transpose(wk.T.reshape(d_model, n_heads, d_head), (1, 0, 2)).astype(dt)
    wvT_h = jnp.transpose(wv.T.reshape(d_model, n_heads, d_head), (1, 0, 2)).astype(dt)
    woT_h = wo.T.reshape(n_heads, d_head, d_model).astype(dt)

    has_mask = mask is not None
    kernel = _make_mha_kernel(float(d_k), has_mask)

    in_specs = [
        pl.BlockSpec((1, m, d_model), lambda b, h: (b, 0, 0)),   # q
        pl.BlockSpec((1, n, d_model), lambda b, h: (b, 0, 0)),   # k
        pl.BlockSpec((1, n, d_model), lambda b, h: (b, 0, 0)),   # v
    ]
    args = [q.astype(dt), k.astype(dt), v.astype(dt)]
    if has_mask:
        in_specs.append(pl.BlockSpec((1, m, n), lambda b, h: (b, 0, 0)))
        args.append(mask.astype(jnp.int8))    # int8: 4x less mask DMA than int32
    in_specs += [
        pl.BlockSpec((1, d_model, d_head), lambda b, h: (h, 0, 0)),   # Wq^T head
        pl.BlockSpec((1, d_model, d_head), lambda b, h: (h, 0, 0)),   # Wk^T head
        pl.BlockSpec((1, d_model, d_head), lambda b, h: (h, 0, 0)),   # Wv^T head
        pl.BlockSpec((1, d_head, d_model), lambda b, h: (h, 0, 0)),   # Wo^T head
    ]
    args += [wqT_h, wkT_h, wvT_h, woT_h]

    grid_spec = pltpu.PrefetchScalarGridSpec(
        num_scalar_prefetch=0,
        grid=(B, n_heads),               # q/k/v/mask blocks constant across h -> DMA'd once per b
        in_specs=in_specs,
        out_specs=pl.BlockSpec((1, m, d_model), lambda b, h: (b, 0, 0)),
        scratch_shapes=[pltpu.VMEM((m, d_model), jnp.float32)],   # head accumulator
    )

    return pl.pallas_call(
        kernel,
        out_shape=jax.ShapeDtypeStruct((B, m, d_model), dt),
        grid_spec=grid_spec,
        compiler_params=pltpu.CompilerParams(
            dimension_semantics=("parallel", "arbitrary"),
            vmem_limit_bytes=32 * 1024 * 1024,
        ),
    )(*args)


def _mha_reference(q, k, v, wq, wk, wv, wo, mask, d_k, n_heads):
    """Pure-JAX f32 reference mirroring the PyTorch module exactly."""
    d_model = q.shape[-1]
    dh = d_model // n_heads
    f32 = jnp.float32
    qp = q.astype(f32) @ wq.astype(f32).T
    kp = k.astype(f32) @ wk.astype(f32).T
    vp = v.astype(f32) @ wv.astype(f32).T
    heads = []
    for h in range(n_heads):
        qh = qp[..., h * dh:(h + 1) * dh]
        kh = kp[..., h * dh:(h + 1) * dh]
        vh = vp[..., h * dh:(h + 1) * dh]
        s = jnp.einsum('bmd,bnd->bmn', qh, kh)
        if mask is not None:
            s = jnp.where(mask, -jnp.inf, s)
        a = jax.nn.softmax(s / (d_k ** 0.5), axis=-1)
        heads.append(jnp.einsum('bmn,bnd->bmd', a, vh))
    ctx = jnp.concatenate(heads, axis=-1)
    return ctx @ wo.astype(f32).T


if __name__ == "__main__":
    key = jax.random.PRNGKey(0)
    B, m, n = 2, 8, 8
    d_model, n_heads = 32, 4
    d_head = d_model // n_heads
    d_k = d_head

    keys = jax.random.split(key, 8)
    q = jax.random.normal(keys[0], (B, m, d_model), dtype=jnp.float32)
    k = jax.random.normal(keys[1], (B, n, d_model), dtype=jnp.float32)
    v = jax.random.normal(keys[2], (B, n, d_model), dtype=jnp.float32)
    limit = (6.0 / (d_model + d_model)) ** 0.5      # xavier_uniform
    wq = jax.random.uniform(keys[3], (d_model, d_model), jnp.float32, -limit, limit)
    wk = jax.random.uniform(keys[4], (d_model, d_model), jnp.float32, -limit, limit)
    wv = jax.random.uniform(keys[5], (d_model, d_model), jnp.float32, -limit, limit)
    wo = jax.random.uniform(keys[6], (d_model, d_model), jnp.float32, -limit, limit)
    # Boolean mask (True = masked); keep column 0 unmasked so no row is all -inf.
    mask = jax.random.bernoulli(keys[7], 0.3, (B, m, n))
    mask = mask.at[:, :, 0].set(False)

    ref = _mha_reference(q, k, v, wq, wk, wv, wo, mask, float(d_k), n_heads)

    # f32 path (tight check; approx-reciprocal is the only deviation).
    out_f32 = multi_head_attention(q, k, v, wq, wk, wv, wo,
                                   d_k=d_k, n_heads=n_heads, mask=mask)
    out_f32 = jax.block_until_ready(out_f32)
    assert out_f32.shape == (B, m, d_model)
    assert jnp.allclose(out_f32, ref, atol=1e-2, rtol=1e-2), "f32 path mismatch"

    # bf16 path (the optimized production path; looser check vs f32 reference).
    bf = lambda x: x.astype(jnp.bfloat16)
    out_bf16 = multi_head_attention(bf(q), bf(k), bf(v), bf(wq), bf(wk), bf(wv), bf(wo),
                                    d_k=d_k, n_heads=n_heads, mask=mask)
    out_bf16 = jax.block_until_ready(out_bf16)
    assert out_bf16.dtype == jnp.bfloat16
    err = jnp.max(jnp.abs(out_bf16.astype(jnp.float32) - ref))
    assert err < 0.08 * jnp.max(jnp.abs(ref)) + 1e-2, "bf16 path mismatch"

    # no-mask path exercises the kernel variant with no mask input at all.
    out_nm = multi_head_attention(q, k, v, wq, wk, wv, wo,
                                  d_k=d_k, n_heads=n_heads, mask=None)
    out_nm = jax.block_until_ready(out_nm)
    ref_nm = _mha_reference(q, k, v, wq, wk, wv, wo, None, float(d_k), n_heads)
    assert jnp.allclose(out_nm, ref_nm, atol=1e-2, rtol=1e-2), "no-mask path mismatch"

    print("KERNEL_OK")
</pallas_src>

<mosaic_0001>
module attributes {stable_mosaic.version = 11 : i64} {
  func.func @kernel(%arg0: i32, %arg1: i32, %arg2: memref<1x8x32xf32, #tpu.memory_space<vmem>>, %arg3: memref<1x8x32xf32, #tpu.memory_space<vmem>>, %arg4: memref<1x8x32xf32, #tpu.memory_space<vmem>>, %arg5: memref<1x8x8xi8, #tpu.memory_space<vmem>>, %arg6: memref<1x32x8xf32, #tpu.memory_space<vmem>>, %arg7: memref<1x32x8xf32, #tpu.memory_space<vmem>>, %arg8: memref<1x32x8xf32, #tpu.memory_space<vmem>>, %arg9: memref<1x8x32xf32, #tpu.memory_space<vmem>>, %arg10: memref<1x8x32xf32, #tpu.memory_space<vmem>>, %arg11: memref<8x32xf32, #tpu.memory_space<vmem>>) attributes {dimension_semantics = [#tpu.dimension_semantics<parallel>, #tpu.dimension_semantics<arbitrary>], iteration_bounds = array<i64: 2, 4>, scalar_prefetch = 0 : i64, scratch_operands = 1 : i64, tpu.core_type = #tpu.core_type<tc>, window_params = [{transform_indices = @transform_0, window_bounds = array<i64: 1, 8, 32>}, {transform_indices = @transform_1, window_bounds = array<i64: 1, 8, 32>}, {transform_indices = @transform_2, window_bounds = array<i64: 1, 8, 32>}, {transform_indices = @transform_3, window_bounds = array<i64: 1, 8, 8>}, {transform_indices = @transform_4, window_bounds = array<i64: 1, 32, 8>}, {transform_indices = @transform_5, window_bounds = array<i64: 1, 32, 8>}, {transform_indices = @transform_6, window_bounds = array<i64: 1, 32, 8>}, {transform_indices = @transform_7, window_bounds = array<i64: 1, 8, 32>}, {transform_indices = @transform_8, window_bounds = array<i64: 1, 8, 32>}]} {
    %c0 = arith.constant 0 : index
    %c0_0 = arith.constant 0 : index
    %c0_1 = arith.constant 0 : index
    %0 = vector.load %arg2[%c0, %c0_0, %c0_1] : memref<1x8x32xf32, #tpu.memory_space<vmem>>, vector<1x8x32xf32>
    %1 = vector.shape_cast %0 : vector<1x8x32xf32> to vector<8x32xf32>
    %c0_2 = arith.constant 0 : index
    %c0_3 = arith.constant 0 : index
    %c0_4 = arith.constant 0 : index
    %2 = vector.load %arg3[%c0_2, %c0_3, %c0_4] : memref<1x8x32xf32, #tpu.memory_space<vmem>>, vector<1x8x32xf32>
    %3 = vector.shape_cast %2 : vector<1x8x32xf32> to vector<8x32xf32>
    %c0_5 = arith.constant 0 : index
    %c0_6 = arith.constant 0 : index
    %c0_7 = arith.constant 0 : index
    %4 = vector.load %arg4[%c0_5, %c0_6, %c0_7] : memref<1x8x32xf32, #tpu.memory_space<vmem>>, vector<1x8x32xf32>
    %5 = vector.shape_cast %4 : vector<1x8x32xf32> to vector<8x32xf32>
    %c0_8 = arith.constant 0 : index
    %c0_9 = arith.constant 0 : index
    %c0_10 = arith.constant 0 : index
    %6 = vector.load %arg6[%c0_8, %c0_9, %c0_10] : memref<1x32x8xf32, #tpu.memory_space<vmem>>, vector<1x32x8xf32>
    %7 = vector.shape_cast %6 : vector<1x32x8xf32> to vector<32x8xf32>
    %c0_11 = arith.constant 0 : index
    %c0_12 = arith.constant 0 : index
    %c0_13 = arith.constant 0 : index
    %8 = vector.load %arg7[%c0_11, %c0_12, %c0_13] : memref<1x32x8xf32, #tpu.memory_space<vmem>>, vector<1x32x8xf32>
    %9 = vector.shape_cast %8 : vector<1x32x8xf32> to vector<32x8xf32>
    %c0_14 = arith.constant 0 : index
    %c0_15 = arith.constant 0 : index
    %c0_16 = arith.constant 0 : index
    %10 = vector.load %arg8[%c0_14, %c0_15, %c0_16] : memref<1x32x8xf32, #tpu.memory_space<vmem>>, vector<1x32x8xf32>
    %11 = vector.shape_cast %10 : vector<1x32x8xf32> to vector<32x8xf32>
    %c0_17 = arith.constant 0 : index
    %c0_18 = arith.constant 0 : index
    %c0_19 = arith.constant 0 : index
    %12 = vector.load %arg9[%c0_17, %c0_18, %c0_19] : memref<1x8x32xf32, #tpu.memory_space<vmem>>, vector<1x8x32xf32>
    %13 = vector.shape_cast %12 : vector<1x8x32xf32> to vector<8x32xf32>
    %cst = arith.constant dense<0.000000e+00> : vector<8x8xf32>
    %14 = tpu.matmul %1, %7, %cst {dimension_numbers = #tpu.dot_dimension_numbers<[1], [0], [0], [1], [0, 0, 1, 1], [], []>} : vector<8x32xf32>, vector<32x8xf32>, vector<8x8xf32> -> vector<8x8xf32>
    %cst_20 = arith.constant dense<0.000000e+00> : vector<8x8xf32>
    %15 = tpu.matmul %3, %9, %cst_20 {dimension_numbers = #tpu.dot_dimension_numbers<[1], [0], [0], [1], [0, 0, 1, 1], [], []>} : vector<8x32xf32>, vector<32x8xf32>, vector<8x8xf32> -> vector<8x8xf32>
    %cst_21 = arith.constant dense<0.000000e+00> : vector<8x8xf32>
    %16 = tpu.matmul %5, %11, %cst_21 {dimension_numbers = #tpu.dot_dimension_numbers<[1], [0], [0], [1], [0, 0, 1, 1], [], []>} : vector<8x32xf32>, vector<32x8xf32>, vector<8x8xf32> -> vector<8x8xf32>
    %cst_22 = arith.constant 0.353553385 : f32
    %17 = vector.broadcast %cst_22 : f32 to vector<8x8xf32>
    %18 = arith.mulf %14, %17 : vector<8x8xf32>
    %cst_23 = arith.constant dense<0.000000e+00> : vector<8x8xf32>
    %19 = tpu.matmul %18, %15, %cst_23 {dimension_numbers = #tpu.dot_dimension_numbers<[1], [1], [0], [0], [0, 0, 1, 0], [], []>} : vector<8x8xf32>, vector<8x8xf32>, vector<8x8xf32> -> vector<8x8xf32>
    %c0_24 = arith.constant 0 : index
    %c0_25 = arith.constant 0 : index
    %c0_26 = arith.constant 0 : index
    %20 = vector.load %arg5[%c0_24, %c0_25, %c0_26] : memref<1x8x8xi8, #tpu.memory_space<vmem>>, vector<1x8x8xi8>
    %21 = vector.shape_cast %20 : vector<1x8x8xi8> to vector<8x8xi8>
    %c0_i8 = arith.constant 0 : i8
    %22 = vector.broadcast %c0_i8 : i8 to vector<8x8xi8>
    %23 = arith.cmpi ne, %21, %22 : vector<8x8xi8>
    %cst_27 = arith.constant 0xFF800000 : f32
    %24 = vector.broadcast %cst_27 : f32 to vector<8x8xf32>
    %25 = arith.select %23, %24, %19 : vector<8x8xi1>, vector<8x8xf32>
    %cst_28 = arith.constant dense<0xFF800000> : vector<8xf32>
    %26 = vector.multi_reduction <maximumf>, %25, %cst_28 [1] : vector<8x8xf32> to vector<8xf32>
    %27 = vector.shape_cast %26 : vector<8xf32> to vector<8x1xf32>
    %28 = vector.broadcast %27 : vector<8x1xf32> to vector<8x8xf32>
    %29 = arith.subf %25, %28 : vector<8x8xf32>
    %30 = math.exp %29 : vector<8x8xf32>
    %cst_29 = arith.constant dense<0.000000e+00> : vector<8xf32>
    %31 = vector.multi_reduction <add>, %30, %cst_29 [1] : vector<8x8xf32> to vector<8xf32>
    %32 = vector.shape_cast %31 : vector<8xf32> to vector<8x1xf32>
    %33 = tpu.reciprocal %32 {approx = true} : vector<8x1xf32> -> vector<8x1xf32>
    %34 = vector.broadcast %33 : vector<8x1xf32> to vector<8x8xf32>
    %35 = arith.mulf %30, %34 : vector<8x8xf32>
    %cst_30 = arith.constant dense<0.000000e+00> : vector<8x8xf32>
    %36 = tpu.matmul %35, %16, %cst_30 {dimension_numbers = #tpu.dot_dimension_numbers<[1], [0], [0], [1], [0, 0, 1, 1], [], []>} : vector<8x8xf32>, vector<8x8xf32>, vector<8x8xf32> -> vector<8x8xf32>
    %cst_31 = arith.constant dense<0.000000e+00> : vector<8x32xf32>
    %37 = tpu.matmul %36, %13, %cst_31 {dimension_numbers = #tpu.dot_dimension_numbers<[1], [0], [0], [1], [0, 0, 1, 1], [], []>} : vector<8x8xf32>, vector<8x32xf32>, vector<8x32xf32> -> vector<8x32xf32>
    %c0_i32 = arith.constant 0 : i32
    %38 = arith.cmpi eq, %arg1, %c0_i32 : i32
    %39 = arith.extui %38 : i1 to i32
    %c0_i32_32 = arith.constant 0 : i32
    %40 = arith.cmpi ne, %39, %c0_i32_32 : i32
    scf.if %40 {
      %cst_38 = arith.constant 0.000000e+00 : f32
      %47 = vector.broadcast %cst_38 : f32 to vector<8x32xf32>
      %c0_39 = arith.constant 0 : index
      %c0_40 = arith.constant 0 : index
      %48 = vector.load %arg11[%c0_39, %c0_40] : memref<8x32xf32, #tpu.memory_space<vmem>>, vector<8x32xf32>
      tpu.vector_store %arg11[%c0_39, %c0_40], %47 {strides = array<i32>} : memref<8x32xf32, #tpu.memory_space<vmem>>, vector<8x32xf32>,
    } else {
    }
    %c0_33 = arith.constant 0 : index
    %c0_34 = arith.constant 0 : index
    %41 = vector.load %arg11[%c0_33, %c0_34] : memref<8x32xf32, #tpu.memory_space<vmem>>, vector<8x32xf32>
    %42 = arith.addf %41, %37 : vector<8x32xf32>
    %c0_35 = arith.constant 0 : index
    %c0_36 = arith.constant 0 : index
    %43 = vector.load %arg11[%c0_35, %c0_36] : memref<8x32xf32, #tpu.memory_space<vmem>>, vector<8x32xf32>
    tpu.vector_store %arg11[%c0_35, %c0_36], %42 {strides = array<i32>} : memref<8x32xf32, #tpu.memory_space<vmem>>, vector<8x32xf32>,
    %c3_i32 = arith.constant 3 : i32
    %44 = arith.cmpi eq, %arg1, %c3_i32 : i32
    %45 = arith.extui %44 : i1 to i32
    %c0_i32_37 = arith.constant 0 : i32
    %46 = arith.cmpi ne, %45, %c0_i32_37 : i32
    scf.if %46 {
      %c0_38 = arith.constant 0 : index
      %c0_39 = arith.constant 0 : index
      %47 = vector.load %arg11[%c0_38, %c0_39] : memref<8x32xf32, #tpu.memory_space<vmem>>, vector<8x32xf32>
      %c0_40 = arith.constant 0 : index
      %c0_41 = arith.constant 0 : index
      %c0_42 = arith.constant 0 : index
      %48 = vector.load %arg10[%c0_40, %c0_41, %c0_42] : memref<1x8x32xf32, #tpu.memory_space<vmem>>, vector<1x8x32xf32>
      %49 = vector.shape_cast %48 : vector<1x8x32xf32> to vector<8x32xf32>
      %50 = vector.shape_cast %47 : vector<8x32xf32> to vector<1x8x32xf32>
      tpu.vector_store %arg10[%c0_40, %c0_41, %c0_42], %50 {strides = array<i32>} : memref<1x8x32xf32, #tpu.memory_space<vmem>>, vector<1x8x32xf32>,
    } else {
    }
    return
  }
  func.func @transform_0(%arg0: i32, %arg1: i32) -> (i32, i32, i32) {
    %c0_i32 = arith.constant 0 : i32
    %c0_i32_0 = arith.constant 0 : i32
    %c0_i32_1 = arith.constant 0 : i32
    return %arg0, %c0_i32, %c0_i32_0 : i32, i32, i32
  }
  func.func @transform_1(%arg0: i32, %arg1: i32) -> (i32, i32, i32) {
    %c0_i32 = arith.constant 0 : i32
    %c0_i32_0 = arith.constant 0 : i32
    %c0_i32_1 = arith.constant 0 : i32
    return %arg0, %c0_i32, %c0_i32_0 : i32, i32, i32
  }
  func.func @transform_2(%arg0: i32, %arg1: i32) -> (i32, i32, i32) {
    %c0_i32 = arith.constant 0 : i32
    %c0_i32_0 = arith.constant 0 : i32
    %c0_i32_1 = arith.constant 0 : i32
    return %arg0, %c0_i32, %c0_i32_0 : i32, i32, i32
  }
  func.func @transform_3(%arg0: i32, %arg1: i32) -> (i32, i32, i32) {
    %c0_i32 = arith.constant 0 : i32
    %c0_i32_0 = arith.constant 0 : i32
    %c0_i32_1 = arith.constant 0 : i32
    return %arg0, %c0_i32, %c0_i32_0 : i32, i32, i32
  }
  func.func @transform_4(%arg0: i32, %arg1: i32) -> (i32, i32, i32) {
    %c0_i32 = arith.constant 0 : i32
    %c0_i32_0 = arith.constant 0 : i32
    %c0_i32_1 = arith.constant 0 : i32
    return %arg1, %c0_i32, %c0_i32_0 : i32, i32, i32
  }
  func.func @transform_5(%arg0: i32, %arg1: i32) -> (i32, i32, i32) {
    %c0_i32 = arith.constant 0 : i32
    %c0_i32_0 = arith.constant 0 : i32
    %c0_i32_1 = arith.constant 0 : i32
    return %arg1, %c0_i32, %c0_i32_0 : i32, i32, i32
  }
  func.func @transform_6(%arg0: i32, %arg1: i32) -> (i32, i32, i32) {
    %c0_i32 = arith.constant 0 : i32
    %c0_i32_0 = arith.constant 0 : i32
    %c0_i32_1 = arith.constant 0 : i32
    return %arg1, %c0_i32, %c0_i32_0 : i32, i32, i32
  }
  func.func @transform_7(%arg0: i32, %arg1: i32) -> (i32, i32, i32) {
    %c0_i32 = arith.constant 0 : i32
    %c0_i32_0 = arith.constant 0 : i32
    %c0_i32_1 = arith.constant 0 : i32
    return %arg1, %c0_i32, %c0_i32_0 : i32, i32, i32
  }
  func.func @transform_8(%arg0: i32, %arg1: i32) -> (i32, i32, i32) {
    %c0_i32 = arith.constant 0 : i32
    %c0_i32_0 = arith.constant 0 : i32
    %c0_i32_1 = arith.constant 0 : i32
    return %arg0, %c0_i32, %c0_i32_0 : i32, i32, i32
  }
}

</mosaic_0001>

<llo_original>
// kernel: tpu_custom_call.1
$region0: #{tpu_custom_call.1}
  #allocation0 [shape = 'u32[]', space=smem, size = 0x4, offset = 0x4, fixed_abs, tag = 'smem constant byte address 0x4 - core index']
  #allocation1 [shape = 'u32[144,128]{1,0:T(1,128)}', space=vmem, size = 0x12000, scoped, tag = 'internal scratch']
  #allocation2 [shape = 'f32[8,32]{1,0:T(8,128)}', space=vmem, size = 0x1000, scoped, tag = 'scratch operand']
  %s0 = inlined_call_operand.vmem [shape: f32[2,8,32], index: 0, kind: input, shape index: {}]
  %s1 = inlined_call_operand.vmem [shape: f32[2,8,32], index: 1, kind: input, shape index: {}]
  %s2 = inlined_call_operand.vmem [shape: f32[2,8,32], index: 2, kind: input, shape index: {}]
  %s3 = inlined_call_operand.vmem [shape: s8[2,8,8], index: 3, kind: input, shape index: {}]
  %s4 = inlined_call_operand.vmem [shape: f32[4,32,8], index: 4, kind: input, shape index: {}]
  %s5 = inlined_call_operand.vmem [shape: f32[4,32,8], index: 5, kind: input, shape index: {}]
  %s6 = inlined_call_operand.vmem [shape: f32[4,32,8], index: 6, kind: input, shape index: {}]
  %s7 = inlined_call_operand.vmem [shape: f32[4,8,32], index: 7, kind: input, shape index: {}]
  %s8 = inlined_call_operand.hbm [shape: f32[2,8,32], index: 8, kind: output, shape index: {}]
  %s9 = sld [smem:[#allocation0]]
  $region73: #{tpu_custom_call.1} parent=0
    _
  %s11 = ssub.s32 1, %s9
  %s12 = scalar_select 0, %s11, %s9
  $region1: #{tpu_custom_call.1} parent=0
    #allocation3 [shape = 'u8[8192]{0}', space=vmem, size = 0x2000, scoped, tag = 'output window, operand 0']
    #allocation4 [shape = 's32[2]{0}', space=sflag, size = 0x8, scoped, tag = 'scoped memory for tpu_custom_call.1']
    %13 = vsyncpa [#allocation4], 0
    %s14 = scalar_lea.sflag [#allocation4], 1
    %15 = vsyncpa %s14, 0
    loop: start=0, step=1, limit=10
    $region2: #{tpu_custom_call.1} parent=1 // loop_pre_header
      _
    $region3: #{tpu_custom_call.1} parent=1 // loop_header
      %s17 = sphi 0, %s21
      %p18 = scmp.ge.s32.totalorder %s17, 10
      %s24 = sphi 0, %s36
      %s25 = sphi 0, %s32
      %s26 = sphi 0, %s24
      %s27 = sphi 0, %s25
      %s28 = sphi 0, %s26
      %s29 = sphi 0, %s27
      %s39 = sphi 0, %s41
      %s42 = sphi 0, %s39
      %s43 = sphi 0, %s42
      %s59 = sphi 0, %s43
      %s65 = sphi 0, %s67
      %s68 = sphi 0, %s65
      %s69 = sphi 0, %s68
      %s85 = sphi 0, %s69
      %s91 = sphi 0, %s93
      %s94 = sphi 0, %s91
      %s95 = sphi 0, %s94
      %s111 = sphi 0, %s95
      %s117 = sphi 0, %s119
      %s120 = sphi 0, %s117
      %s121 = sphi 0, %s120
      %s137 = sphi 0, %s121
      %s143 = sphi 0, %s145
      %s146 = sphi 0, %s143
      %s147 = sphi 0, %s146
      %s163 = sphi 0, %s147
      %s169 = sphi 0, %s171
      %s172 = sphi 0, %s169
      %s173 = sphi 0, %s172
      %s189 = sphi 0, %s173
      %s195 = sphi 0, %s197
      %s198 = sphi 0, %s195
      %s199 = sphi 0, %s198
      %s215 = sphi 0, %s199
      %s221 = sphi 0, %s223
      %s224 = sphi 0, %s221
      %s225 = sphi 0, %s224
      %s241 = sphi 0, %s225
      %s247 = sphi 0, %s249
      %s250 = sphi 0, %s247
      %s251 = sphi 0, %s250
      %s267 = sphi 0, %s251
    $region4: #{tpu_custom_call.1} parent=1 // loop_header_branch
      %20 = sbr.rel (%p18) target = $region8
    $region5: #{tpu_custom_call.1} parent=1 // loop_body
      %s22 = ssub.s32 %s17, 1
      %s23 = ssub.s32 %s17, 2
      %s30 = sadd.s32 1, %s25
      %p31 = scmp.ge.s32.totalorder %s30, 4
      %s32 = scalar_select %p31, 0, %s30
      %s33 = sadd.s32 1, %s24
      %s34 = scalar_select %p31, %s33, %s24
      %p35 = scmp.ge.s32.totalorder %s34, 2
      %s36 = scalar_select %p35, 0, %s34
      %s37 = ssub.s32 %s24, %s36
      %p38 = scmp.eq.s32.totalorder %s37, 0
      %s40 = sadd.s32 %s39, 1
      %s41 = scalar_select %p38, %s39, %s40
      %p44 = pneg %p38
      %p45 = scmp.eq.s32.totalorder %s17, 7
      %p46 = por %p44, %p45
      %p47 = scmp.ne.s32.totalorder %s39, %s42
      %p48 = scmp.eq.s32.totalorder %s17, 0
      %p49 = por %p47, %p48
      %p50 = scmp.ne.s32.totalorder %s39, %s42
      %p51 = scmp.eq.s32.totalorder %s22, 7
      %p52 = por %p50, %p51
      %p53 = scmp.ne.s32.totalorder %s42, %s43
      %p54 = scmp.eq.s32.totalorder %s22, 0
      %p55 = por %p53, %p54
      %p56 = scmp.ne.s32.totalorder %s42, %s43
      %p57 = scmp.eq.s32.totalorder %s23, 7
      %p58 = por %p56, %p57
      %p60 = scmp.ne.s32.totalorder %s43, %s59
      %p61 = scmp.eq.s32.totalorder %s23, 0
      %p62 = por %p60, %p61
      %s63 = ssub.s32 %s24, %s36
      %p64 = scmp.eq.s32.totalorder %s63, 0
      %s66 = sadd.s32 %s65, 1
      %s67 = scalar_select %p64, %s65, %s66
      %p70 = pneg %p64
      %p71 = scmp.eq.s32.totalorder %s17, 7
      %p72 = por %p70, %p71
      %p73 = scmp.ne.s32.totalorder %s65, %s68
      %p74 = scmp.eq.s32.totalorder %s17, 0
      %p75 = por %p73, %p74
      %p76 = scmp.ne.s32.totalorder %s65, %s68
      %p77 = scmp.eq.s32.totalorder %s22, 7
      %p78 = por %p76, %p77
      %p79 = scmp.ne.s32.totalorder %s68, %s69
      %p80 = scmp.eq.s32.totalorder %s22, 0
      %p81 = por %p79, %p80
      %p82 = scmp.ne.s32.totalorder %s68, %s69
      %p83 = scmp.eq.s32.totalorder %s23, 7
      %p84 = por %p82, %p83
      %p86 = scmp.ne.s32.totalorder %s69, %s85
      %p87 = scmp.eq.s32.totalorder %s23, 0
      %p88 = por %p86, %p87
      %s89 = ssub.s32 %s24, %s36
      %p90 = scmp.eq.s32.totalorder %s89, 0
      %s92 = sadd.s32 %s91, 1
      %s93 = scalar_select %p90, %s91, %s92
      %p96 = pneg %p90
      %p97 = scmp.eq.s32.totalorder %s17, 7
      %p98 = por %p96, %p97
      %p99 = scmp.ne.s32.totalorder %s91, %s94
      %p100 = scmp.eq.s32.totalorder %s17, 0
      %p101 = por %p99, %p100
      %p102 = scmp.ne.s32.totalorder %s91, %s94
      %p103 = scmp.eq.s32.totalorder %s22, 7
      %p104 = por %p102, %p103
      %p105 = scmp.ne.s32.totalorder %s94, %s95
      %p106 = scmp.eq.s32.totalorder %s22, 0
      %p107 = por %p105, %p106
      %p108 = scmp.ne.s32.totalorder %s94, %s95
      %p109 = scmp.eq.s32.totalorder %s23, 7
      %p110 = por %p108, %p109
      %p112 = scmp.ne.s32.totalorder %s95, %s111
      %p113 = scmp.eq.s32.totalorder %s23, 0
      %p114 = por %p112, %p113
      %s115 = ssub.s32 %s24, %s36
      %p116 = scmp.eq.s32.totalorder %s115, 0
      %s118 = sadd.s32 %s117, 1
      %s119 = scalar_select %p116, %s117, %s118
      %p122 = pneg %p116
      %p123 = scmp.eq.s32.totalorder %s17, 7
      %p124 = por %p122, %p123
      %p125 = scmp.ne.s32.totalorder %s117, %s120
      %p126 = scmp.eq.s32.totalorder %s17, 0
      %p127 = por %p125, %p126
      %p128 = scmp.ne.s32.totalorder %s117, %s120
      %p129 = scmp.eq.s32.totalorder %s22, 7
      %p130 = por %p128, %p129
      %p131 = scmp.ne.s32.totalorder %s120, %s121
      %p132 = scmp.eq.s32.totalorder %s22, 0
      %p133 = por %p131, %p132
      %p134 = scmp.ne.s32.totalorder %s120, %s121
      %p135 = scmp.eq.s32.totalorder %s23, 7
      %p136 = por %p134, %p135
      %p138 = scmp.ne.s32.totalorder %s121, %s137
      %p139 = scmp.eq.s32.totalorder %s23, 0
      %p140 = por %p138, %p139
      %s141 = ssub.s32 %s25, %s32
      %p142 = scmp.eq.s32.totalorder %s141, 0
      %s144 = sadd.s32 %s143, 1
      %s145 = scalar_select %p142, %s143, %s144
      %p148 = pneg %p142
      %p149 = scmp.eq.s32.totalorder %s17, 7
      %p150 = por %p148, %p149
      %p151 = scmp.ne.s32.totalorder %s143, %s146
      %p152 = scmp.eq.s32.totalorder %s17, 0
      %p153 = por %p151, %p152
      %p154 = scmp.ne.s32.totalorder %s143, %s146
      %p155 = scmp.eq.s32.totalorder %s22, 7
      %p156 = por %p154, %p155
      %p157 = scmp.ne.s32.totalorder %s146, %s147
      %p158 = scmp.eq.s32.totalorder %s22, 0
      %p159 = por %p157, %p158
      %p160 = scmp.ne.s32.totalorder %s146, %s147
      %p161 = scmp.eq.s32.totalorder %s23, 7
      %p162 = por %p160, %p161
      %p164 = scmp.ne.s32.totalorder %s147, %s163
      %p165 = scmp.eq.s32.totalorder %s23, 0
      %p166 = por %p164, %p165
      %s167 = ssub.s32 %s25, %s32
      %p168 = scmp.eq.s32.totalorder %s167, 0
      %s170 = sadd.s32 %s169, 1
      %s171 = scalar_select %p168, %s169, %s170
      %p174 = pneg %p168
      %p175 = scmp.eq.s32.totalorder %s17, 7
      %p176 = por %p174, %p175
      %p177 = scmp.ne.s32.totalorder %s169, %s172
      %p178 = scmp.eq.s32.totalorder %s17, 0
      %p179 = por %p177, %p178
      %p180 = scmp.ne.s32.totalorder %s169, %s172
      %p181 = scmp.eq.s32.totalorder %s22, 7
      %p182 = por %p180, %p181
      %p183 = scmp.ne.s32.totalorder %s172, %s173
      %p184 = scmp.eq.s32.totalorder %s22, 0
      %p185 = por %p183, %p184
      %p186 = scmp.ne.s32.totalorder %s172, %s173
      %p187 = scmp.eq.s32.totalorder %s23, 7
      %p188 = por %p186, %p187
      %p190 = scmp.ne.s32.totalorder %s173, %s189
      %p191 = scmp.eq.s32.totalorder %s23, 0
      %p192 = por %p190, %p191
      %s193 = ssub.s32 %s25, %s32
      %p194 = scmp.eq.s32.totalorder %s193, 0
      %s196 = sadd.s32 %s195, 1
      %s197 = scalar_select %p194, %s195, %s196
      %p200 = pneg %p194
      %p201 = scmp.eq.s32.totalorder %s17, 7
      %p202 = por %p200, %p201
      %p203 = scmp.ne.s32.totalorder %s195, %s198
      %p204 = scmp.eq.s32.totalorder %s17, 0
      %p205 = por %p203, %p204
      %p206 = scmp.ne.s32.totalorder %s195, %s198
      %p207 = scmp.eq.s32.totalorder %s22, 7
      %p208 = por %p206, %p207
      %p209 = scmp.ne.s32.totalorder %s198, %s199
      %p210 = scmp.eq.s32.totalorder %s22, 0
      %p211 = por %p209, %p210
      %p212 = scmp.ne.s32.totalorder %s198, %s199
      %p213 = scmp.eq.s32.totalorder %s23, 7
      %p214 = por %p212, %p213
      %p216 = scmp.ne.s32.totalorder %s199, %s215
      %p217 = scmp.eq.s32.totalorder %s23, 0
      %p218 = por %p216, %p217
      %s219 = ssub.s32 %s25, %s32
      %p220 = scmp.eq.s32.totalorder %s219, 0
      %s222 = sadd.s32 %s221, 1
      %s223 = scalar_select %p220, %s221, %s222
      %p226 = pneg %p220
      %p227 = scmp.eq.s32.totalorder %s17, 7
      %p228 = por %p226, %p227
      %p229 = scmp.ne.s32.totalorder %s221, %s224
      %p230 = scmp.eq.s32.totalorder %s17, 0
      %p231 = por %p229, %p230
      %p232 = scmp.ne.s32.totalorder %s221, %s224
      %p233 = scmp.eq.s32.totalorder %s22, 7
      %p234 = por %p232, %p233
      %p235 = scmp.ne.s32.totalorder %s224, %s225
      %p236 = scmp.eq.s32.totalorder %s22, 0
      %p237 = por %p235, %p236
      %p238 = scmp.ne.s32.totalorder %s224, %s225
      %p239 = scmp.eq.s32.totalorder %s23, 7
      %p240 = por %p238, %p239
      %p242 = scmp.ne.s32.totalorder %s225, %s241
      %p243 = scmp.eq.s32.totalorder %s23, 0
      %p244 = por %p242, %p243
      %s245 = ssub.s32 %s24, %s36
      %p246 = scmp.eq.s32.totalorder %s245, 0
      %s248 = sadd.s32 %s247, 1
      %s249 = scalar_select %p246, %s247, %s248
      %p252 = pneg %p246
      %p253 = scmp.eq.s32.totalorder %s17, 7
      %p254 = por %p252, %p253
      %p255 = scmp.ne.s32.totalorder %s247, %s250
      %p256 = scmp.eq.s32.totalorder %s17, 0
      %p257 = por %p255, %p256
      %p258 = scmp.ne.s32.totalorder %s247, %s250
      %p259 = scmp.eq.s32.totalorder %s22, 7
      %p260 = por %p258, %p259
      %p261 = scmp.ne.s32.totalorder %s250, %s251
      %p262 = scmp.eq.s32.totalorder %s22, 0
      %p263 = por %p261, %p262
      %p264 = scmp.ne.s32.totalorder %s250, %s251
      %p265 = scmp.eq.s32.totalorder %s23, 7
      %p266 = por %p264, %p265
      %p268 = scmp.ne.s32.totalorder %s251, %s267
      %p269 = scmp.eq.s32.totalorder %s23, 0
      %p270 = por %p268, %p269
      %p271 = scmp.le.s32.totalorder 1, %s17
      %p272 = scmp.lt.s32.totalorder %s17, 9
      %p273 = pnand %p271, %p272
      %p274 = pneg %p273
      // Predicated region
      $region9: #{tpu_custom_call.1} parent=5 // pred_check
        _
      $region10: #{tpu_custom_call.1} parent=5 // pred_check_branch
        %276 = sbr.rel (%p273) target = $region12
      $region11: #{tpu_custom_call.1} parent=5 // pred_region
        %s277 = ssub.s32 %s17, 1
      $region12: #{tpu_custom_call.1} parent=5 // pred_fallthru
        _
      %p278 = scmp.lt.s32.totalorder %s17, 8
      // Predicated region
      $region13: #{tpu_custom_call.1} parent=5 // pred_check
        %p279 = pneg %p278
      $region14: #{tpu_custom_call.1} parent=5 // pred_check_branch
        %281 = sbr.rel (%p279) target = $region16
      $region15: #{tpu_custom_call.1} parent=5 // pred_region
        // Predicated region
        $region17: #{tpu_custom_call.1} parent=15 // pred_check
          %p282 = pneg %p49
        $region18: #{tpu_custom_call.1} parent=15 // pred_check_branch
          %284 = sbr.rel (%p282) target = $region20
        $region19: #{tpu_custom_call.1} parent=15 // pred_region
          %p285 = scmp.lt.s32.totalorder %s24, 1
          %s286 = scalar_select %p285, %s24, 1
          %s287 = smul.addr %s286, 8
          %s288 = scalar_lea.vmem %s0, %s287
        $region20: #{tpu_custom_call.1} parent=15 // pred_fallthru
          _
        // Predicated region
        $region21: #{tpu_custom_call.1} parent=15 // pred_check
          %p289 = pneg %p75
        $region22: #{tpu_custom_call.1} parent=15 // pred_check_branch
          %291 = sbr.rel (%p289) target = $region24
        $region23: #{tpu_custom_call.1} parent=15 // pred_region
          %p292 = scmp.lt.s32.totalorder %s24, 1
          %s293 = scalar_select %p292, %s24, 1
          %s294 = smul.addr %s293, 8
          %s295 = scalar_lea.vmem %s1, %s294
        $region24: #{tpu_custom_call.1} parent=15 // pred_fallthru
          _
        // Predicated region
        $region25: #{tpu_custom_call.1} parent=15 // pred_check
          %p296 = pneg %p101
        $region26: #{tpu_custom_call.1} parent=15 // pred_check_branch
          %298 = sbr.rel (%p296) target = $region28
        $region27: #{tpu_custom_call.1} parent=15 // pred_region
          %p299 = scmp.lt.s32.totalorder %s24, 1
          %s300 = scalar_select %p299, %s24, 1
          %s301 = smul.addr %s300, 8
          %s302 = scalar_lea.vmem %s2, %s301
        $region28: #{tpu_custom_call.1} parent=15 // pred_fallthru
          _
        // Predicated region
        $region29: #{tpu_custom_call.1} parent=15 // pred_check
          %p303 = pneg %p127
        $region30: #{tpu_custom_call.1} parent=15 // pred_check_branch
          %305 = sbr.rel (%p303) target = $region32
        $region31: #{tpu_custom_call.1} parent=15 // pred_region
          %p306 = scmp.lt.s32.totalorder %s24, 1
          %s307 = scalar_select %p306, %s24, 1
          %s308 = smul.addr %s307, 2
          %s309 = scalar_lea.vmem %s3, %s308
        $region32: #{tpu_custom_call.1} parent=15 // pred_fallthru
          _
        // Predicated region
        $region33: #{tpu_custom_call.1} parent=15 // pred_check
          %p310 = pneg %p153
        $region34: #{tpu_custom_call.1} parent=15 // pred_check_branch
          %312 = sbr.rel (%p310) target = $region36
        $region35: #{tpu_custom_call.1} parent=15 // pred_region
          %p313 = scmp.lt.s32.totalorder %s25, 3
          %s314 = scalar_select %p313, %s25, 3
          %s315 = smul.addr %s314, 4
          %s316 = smul.addr %s315, 8
          %s317 = scalar_lea.vmem %s4, %s316
        $region36: #{tpu_custom_call.1} parent=15 // pred_fallthru
          _
        // Predicated region
        $region37: #{tpu_custom_call.1} parent=15 // pred_check
          %p318 = pneg %p179
        $region38: #{tpu_custom_call.1} parent=15 // pred_check_branch
          %320 = sbr.rel (%p318) target = $region40
        $region39: #{tpu_custom_call.1} parent=15 // pred_region
          %p321 = scmp.lt.s32.totalorder %s25, 3
          %s322 = scalar_select %p321, %s25, 3
          %s323 = smul.addr %s322, 4
          %s324 = smul.addr %s323, 8
          %s325 = scalar_lea.vmem %s5, %s324
        $region40: #{tpu_custom_call.1} parent=15 // pred_fallthru
          _
        // Predicated region
        $region41: #{tpu_custom_call.1} parent=15 // pred_check
          %p326 = pneg %p205
        $region42: #{tpu_custom_call.1} parent=15 // pred_check_branch
          %328 = sbr.rel (%p326) target = $region44
        $region43: #{tpu_custom_call.1} parent=15 // pred_region
          %p329 = scmp.lt.s32.totalorder %s25, 3
          %s330 = scalar_select %p329, %s25, 3
          %s331 = smul.addr %s330, 4
          %s332 = smul.addr %s331, 8
          %s333 = scalar_lea.vmem %s6, %s332
        $region44: #{tpu_custom_call.1} parent=15 // pred_fallthru
          _
        // Predicated region
        $region45: #{tpu_custom_call.1} parent=15 // pred_check
          %p334 = pneg %p231
        $region46: #{tpu_custom_call.1} parent=15 // pred_check_branch
          %336 = sbr.rel (%p334) target = $region48
        $region47: #{tpu_custom_call.1} parent=15 // pred_region
          %p337 = scmp.lt.s32.totalorder %s25, 3
          %s338 = scalar_select %p337, %s25, 3
          %s339 = smul.addr %s338, 8
          %s340 = scalar_lea.vmem %s7, %s339
        $region48: #{tpu_custom_call.1} parent=15 // pred_fallthru
          _
      $region16: #{tpu_custom_call.1} parent=5 // pred_fallthru
        _
      %p341 = scmp.le.s32.totalorder 1, %s17
      %p342 = scmp.lt.s32.totalorder %s17, 9
      %p343 = pnand %p341, %p342
      %p344 = pneg %p343
      // Predicated region
      $region49: #{tpu_custom_call.1} parent=5 // pred_check
        _
      $region50: #{tpu_custom_call.1} parent=5 // pred_check_branch
        %346 = sbr.rel (%p343) target = $region52
      $region51: #{tpu_custom_call.1} parent=5 // pred_region
        %s347 = ssub.s32 %s17, 1
        %p348 = scmp.lt.s32.totalorder %s26, 1
        %s349 = scalar_select %p348, %s26, 1
        %s350 = smul.addr %s349, 8
        %s351 = scalar_lea.vmem %s0, %s350
        %p352 = pneg %p55
        %p353 = pneg %p52
        %p354 = scmp.lt.s32.totalorder %s26, 1
        %s355 = scalar_select %p354, %s26, 1
        %s356 = smul.addr %s355, 8
        %s357 = scalar_lea.vmem %s1, %s356
        %p358 = pneg %p81
        %p359 = pneg %p78
        %p360 = scmp.lt.s32.totalorder %s26, 1
        %s361 = scalar_select %p360, %s26, 1
        %s362 = smul.addr %s361, 8
        %s363 = scalar_lea.vmem %s2, %s362
        %p364 = pneg %p107
        %p365 = pneg %p104
        %p366 = scmp.lt.s32.totalorder %s26, 1
        %s367 = scalar_select %p366, %s26, 1
        %s368 = smul.addr %s367, 2
        %s369 = scalar_lea.vmem %s3, %s368
        %p370 = pneg %p133
        %p371 = pneg %p130
        %p372 = scmp.lt.s32.totalorder %s27, 3
        %s373 = scalar_select %p372, %s27, 3
        %s374 = smul.addr %s373, 4
        %s375 = smul.addr %s374, 8
        %s376 = scalar_lea.vmem %s4, %s375
        %p377 = pneg %p159
        %p378 = pneg %p156
        %p379 = scmp.lt.s32.totalorder %s27, 3
        %s380 = scalar_select %p379, %s27, 3
        %s381 = smul.addr %s380, 4
        %s382 = smul.addr %s381, 8
        %s383 = scalar_lea.vmem %s5, %s382
        %p384 = pneg %p185
        %p385 = pneg %p182
        %p386 = scmp.lt.s32.totalorder %s27, 3
        %s387 = scalar_select %p386, %s27, 3
        %s388 = smul.addr %s387, 4
        %s389 = smul.addr %s388, 8
        %s390 = scalar_lea.vmem %s6, %s389
        %p391 = pneg %p211
        %p392 = pneg %p208
        %p393 = scmp.lt.s32.totalorder %s27, 3
        %s394 = scalar_select %p393, %s27, 3
        %s395 = smul.addr %s394, 8
        %s396 = scalar_lea.vmem %s7, %s395
        %p397 = pneg %p237
        %p398 = pneg %p234
        %p399 = pneg %p263
        %p400 = pneg %p260
        %s401 = sand.u32 %s250, 1
        %s402 = scalar_lea.sflag [#allocation4], %s401
        %s403 = sand.u32 %s250, 1
        %s404 = smul.addr %s403, 8
        %s405 = scalar_lea.vmem [#allocation3], %s404
        %p406 = scmp.lt.s32.totalorder %s26, 1
        %s407 = scalar_select %p406, %s26, 1
        %s408 = smul.addr %s407, 8
        %s409 = scalar_lea.vmem %s0, %s408
        %p410 = scmp.lt.s32.totalorder %s26, 1
        %s411 = scalar_select %p410, %s26, 1
        %s412 = smul.addr %s411, 8
        %s413 = scalar_lea.vmem %s1, %s412
        %p414 = scmp.lt.s32.totalorder %s26, 1
        %s415 = scalar_select %p414, %s26, 1
        %s416 = smul.addr %s415, 8
        %s417 = scalar_lea.vmem %s2, %s416
        %p418 = scmp.lt.s32.totalorder %s26, 1
        %s419 = scalar_select %p418, %s26, 1
        %s420 = smul.addr %s419, 2
        %s421 = scalar_lea.vmem %s3, %s420
        %p422 = scmp.lt.s32.totalorder %s27, 3
        %s423 = scalar_select %p422, %s27, 3
        %s424 = smul.addr %s423, 4
        %s425 = smul.addr %s424, 8
        %s426 = scalar_lea.vmem %s4, %s425
        %p427 = scmp.lt.s32.totalorder %s27, 3
        %s428 = scalar_select %p427, %s27, 3
        %s429 = smul.addr %s428, 4
        %s430 = smul.addr %s429, 8
        %s431 = scalar_lea.vmem %s5, %s430
        %p432 = scmp.lt.s32.totalorder %s27, 3
        %s433 = scalar_select %p432, %s27, 3
        %s434 = smul.addr %s433, 4
        %s435 = smul.addr %s434, 8
        %s436 = scalar_lea.vmem %s6, %s435
        %p437 = scmp.lt.s32.totalorder %s27, 3
        %s438 = scalar_select %p437, %s27, 3
        %s439 = smul.addr %s438, 8
        %s440 = scalar_lea.vmem %s7, %s439
        %v443 = vld [vmem:[%s409] sm:$0xff]
        %v444 = vld [vmem:[%s413] sm:$0xff]
        %v445 = vld [vmem:[%s417] sm:$0xff]
        %v446 = vld [vmem:[%s426] sm:$0xff]
        %v447 = vld [vmem:[%s426 + $0x8] sm:$0xff]
        %v448 = vld [vmem:[%s426 + $0x10] sm:$0xff]
        %v449 = vld [vmem:[%s426 + $0x18] sm:$0xff]
        %v450 = vld [vmem:[%s431] sm:$0xff]
        %v451 = vld [vmem:[%s431 + $0x8] sm:$0xff]
        %v452 = vld [vmem:[%s431 + $0x10] sm:$0xff]
        %v453 = vld [vmem:[%s431 + $0x18] sm:$0xff]
        %v454 = vld [vmem:[%s436] sm:$0xff]
        %v455 = vld [vmem:[%s436 + $0x8] sm:$0xff]
        %v456 = vld [vmem:[%s436 + $0x10] sm:$0xff]
        %v457 = vld [vmem:[%s436 + $0x18] sm:$0xff]
        %v458 = vld [vmem:[%s440] sm:$0xff]
        %vm459 = vcmask 261120
        %v461 = vsel %vm459, %v443, 0
        %463 = vmatprep.subr.mxu0 0.0
        %464 = vmatpush1.msra.mxu0 %v446
        %465 = vmatprep.subr.mxu0 0.0
        %466 = vmatpush1.msra.mxu0 %v447
        %467 = vmatprep.subr.mxu0 0.0
        %468 = vmatpush1.msra.mxu0 %v448
        %469 = vmatprep.subr.mxu0 0.0
        %470 = vmatpush1.msra.mxu0 %v449
        %471 = vmatprep.subr.mxu0 0.0
        %472 = vmatpush1.msra.mxu0 0.0
        %473 = vmatprep.subr.mxu0 0.0
        %474 = vmatpush1.msra.mxu0 0.0
        %475 = vmatprep.subr.mxu0 0.0
        %476 = vmatpush1.msra.mxu0 0.0
        %477 = vmatprep.subr.mxu0 0.0
        %478 = vmatpush1.msra.mxu0 0.0
        %479 = vmatprep.subr.mxu0 0.0
        %480 = vmatpush1.msra.mxu0 0.0
        %481 = vmatprep.subr.mxu0 0.0
        %482 = vmatpush1.msra.mxu0 0.0
        %483 = vmatprep.subr.mxu0 0.0
        %484 = vmatpush1.msra.mxu0 0.0
        %485 = vmatprep.subr.mxu0 0.0
        %486 = vmatpush1.msra.mxu0 0.0
        %487 = vmatprep.subr.mxu0 0.0
        %488 = vmatpush1.msra.mxu0 0.0
        %489 = vmatprep.subr.mxu0 0.0
        %490 = vmatpush1.msra.mxu0 0.0
        %491 = vmatprep.subr.mxu0 0.0
        %492 = vmatpush1.msra.mxu0 0.0
        %493 = vmatprep.subr.mxu0 0.0
        %494 = vmatpush1.msra.mxu0 0.0
        %495 = vmatprep.subr.mxu0 0.0
        %496 = vmatpush1.msra.mxu0 0.0
        %497 = vmatprep.subr.mxu0 0.0
        %498 = vmatpush1.msra.mxu0 0.0
        %499 = vmatprep.subr.mxu0 0.0
        %500 = vmatpush1.msra.mxu0 0.0
        %501 = vmatprep.subr.mxu0 0.0
        %502 = vmatpush1.msra.mxu0 0.0
        %503 = vmatprep.subr.mxu0 0.0
        %504 = vmatpush1.msra.mxu0 0.0
        %505 = vmatprep.subr.mxu0 0.0
        %506 = vmatpush1.msra.mxu0 0.0
        %507 = vmatprep.subr.mxu0 0.0
        %508 = vmatpush1.msra.mxu0 0.0
        %509 = vmatprep.subr.mxu0 0.0
        %510 = vmatpush1.msra.mxu0 0.0
        %511 = vmatprep.subr.mxu0 0.0
        %512 = vmatpush1.msra.mxu0 0.0
        %513 = vmatprep.subr.mxu0 0.0
        %514 = vmatpush1.msra.mxu0 0.0
        %515 = vmatprep.subr.mxu0 0.0
        %516 = vmatpush1.msra.mxu0 0.0
        %517 = vmatprep.subr.mxu0 0.0
        %518 = vmatpush1.msra.mxu0 0.0
        %519 = vmatprep.subr.mxu0 0.0
        %520 = vmatpush1.msra.mxu0 0.0
        %521 = vmatprep.subr.mxu0 0.0
        %522 = vmatpush1.msra.mxu0 0.0
        %523 = vmatprep.subr.mxu0 0.0
        %524 = vmatpush1.msra.mxu0 0.0
        %525 = vmatprep.subr.mxu0 0.0
        %526 = vmatpush1.msra.mxu0 0.0
        %527 = vmatprep.mubr.f32.mxu0 0.0
        %528 = vmatmul.mubr.f32.gmra.mrb[0].mxu0 %v461
        %v529 = vpop.f32.mrb[0].mxu0
        %v530 = vadd.f32 0.0, %v529
        %v531 = vpop.f32.mrb[0].mxu0
        %532 = vdwg.mxu0
        %v534 = vsel %vm459, %v444, 0
        %536 = vmatprep.subr.mxu0 0.0
        %537 = vmatpush1.msra.mxu0 %v450
        %538 = vmatprep.subr.mxu0 0.0
        %539 = vmatpush1.msra.mxu0 %v451
        %540 = vmatprep.subr.mxu0 0.0
        %541 = vmatpush1.msra.mxu0 %v452
        %542 = vmatprep.subr.mxu0 0.0
        %543 = vmatpush1.msra.mxu0 %v453
        %544 = vmatprep.subr.mxu0 0.0
        %545 = vmatpush1.msra.mxu0 0.0
        %546 = vmatprep.subr.mxu0 0.0
        %547 = vmatpush1.msra.mxu0 0.0
        %548 = vmatprep.subr.mxu0 0.0
        %549 = vmatpush1.msra.mxu0 0.0
        %550 = vmatprep.subr.mxu0 0.0
        %551 = vmatpush1.msra.mxu0 0.0
        %552 = vmatprep.subr.mxu0 0.0
        %553 = vmatpush1.msra.mxu0 0.0
        %554 = vmatprep.subr.mxu0 0.0
        %555 = vmatpush1.msra.mxu0 0.0
        %556 = vmatprep.subr.mxu0 0.0
        %557 = vmatpush1.msra.mxu0 0.0
        %558 = vmatprep.subr.mxu0 0.0
        %559 = vmatpush1.msra.mxu0 0.0
        %560 = vmatprep.subr.mxu0 0.0
        %561 = vmatpush1.msra.mxu0 0.0
        %562 = vmatprep.subr.mxu0 0.0
        %563 = vmatpush1.msra.mxu0 0.0
        %564 = vmatprep.subr.mxu0 0.0
        %565 = vmatpush1.msra.mxu0 0.0
        %566 = vmatprep.subr.mxu0 0.0
        %567 = vmatpush1.msra.mxu0 0.0
        %568 = vmatprep.subr.mxu0 0.0
        %569 = vmatpush1.msra.mxu0 0.0
        %570 = vmatprep.subr.mxu0 0.0
        %571 = vmatpush1.msra.mxu0 0.0
        %572 = vmatprep.subr.mxu0 0.0
        %573 = vmatpush1.msra.mxu0 0.0
        %574 = vmatprep.subr.mxu0 0.0
        %575 = vmatpush1.msra.mxu0 0.0
        %576 = vmatprep.subr.mxu0 0.0
        %577 = vmatpush1.msra.mxu0 0.0
        %578 = vmatprep.subr.mxu0 0.0
        %579 = vmatpush1.msra.mxu0 0.0
        %580 = vmatprep.subr.mxu0 0.0
        %581 = vmatpush1.msra.mxu0 0.0
        %582 = vmatprep.subr.mxu0 0.0
        %583 = vmatpush1.msra.mxu0 0.0
        %584 = vmatprep.subr.mxu0 0.0
        %585 = vmatpush1.msra.mxu0 0.0
        %586 = vmatprep.subr.mxu0 0.0
        %587 = vmatpush1.msra.mxu0 0.0
        %588 = vmatprep.subr.mxu0 0.0
        %589 = vmatpush1.msra.mxu0 0.0
        %590 = vmatprep.subr.mxu0 0.0
        %591 = vmatpush1.msra.mxu0 0.0
        %592 = vmatprep.subr.mxu0 0.0
        %593 = vmatpush1.msra.mxu0 0.0
        %594 = vmatprep.subr.mxu0 0.0
        %595 = vmatpush1.msra.mxu0 0.0
        %596 = vmatprep.subr.mxu0 0.0
        %597 = vmatpush1.msra.mxu0 0.0
        %598 = vmatprep.subr.mxu0 0.0
        %599 = vmatpush1.msra.mxu0 0.0
        %600 = vmatprep.mubr.f32.mxu0 0.0
        %601 = vmatmul.mubr.f32.gmra.mrb[0].mxu0 %v534
        %v602 = vpop.f32.mrb[0].mxu0
        %v603 = vadd.f32 0.0, %v602
        %v604 = vpop.f32.mrb[0].mxu0
        %605 = vdwg.mxu0
        %v607 = vsel %vm459, %v445, 0
        %609 = vmatprep.subr.mxu0 0.0
        %610 = vmatpush1.msra.mxu0 %v454
        %611 = vmatprep.subr.mxu0 0.0
        %612 = vmatpush1.msra.mxu0 %v455
        %613 = vmatprep.subr.mxu0 0.0
        %614 = vmatpush1.msra.mxu0 %v456
        %615 = vmatprep.subr.mxu0 0.0
        %616 = vmatpush1.msra.mxu0 %v457
        %617 = vmatprep.subr.mxu0 0.0
        %618 = vmatpush1.msra.mxu0 0.0
        %619 = vmatprep.subr.mxu0 0.0
        %620 = vmatpush1.msra.mxu0 0.0
        %621 = vmatprep.subr.mxu0 0.0
        %622 = vmatpush1.msra.mxu0 0.0
        %623 = vmatprep.subr.mxu0 0.0
        %624 = vmatpush1.msra.mxu0 0.0
        %625 = vmatprep.subr.mxu0 0.0
        %626 = vmatpush1.msra.mxu0 0.0
        %627 = vmatprep.subr.mxu0 0.0
        %628 = vmatpush1.msra.mxu0 0.0
        %629 = vmatprep.subr.mxu0 0.0
        %630 = vmatpush1.msra.mxu0 0.0
        %631 = vmatprep.subr.mxu0 0.0
        %632 = vmatpush1.msra.mxu0 0.0
        %633 = vmatprep.subr.mxu0 0.0
        %634 = vmatpush1.msra.mxu0 0.0
        %635 = vmatprep.subr.mxu0 0.0
        %636 = vmatpush1.msra.mxu0 0.0
        %637 = vmatprep.subr.mxu0 0.0
        %638 = vmatpush1.msra.mxu0 0.0
        %639 = vmatprep.subr.mxu0 0.0
        %640 = vmatpush1.msra.mxu0 0.0
        %641 = vmatprep.subr.mxu0 0.0
        %642 = vmatpush1.msra.mxu0 0.0
        %643 = vmatprep.subr.mxu0 0.0
        %644 = vmatpush1.msra.mxu0 0.0
        %645 = vmatprep.subr.mxu0 0.0
        %646 = vmatpush1.msra.mxu0 0.0
        %647 = vmatprep.subr.mxu0 0.0
        %648 = vmatpush1.msra.mxu0 0.0
        %649 = vmatprep.subr.mxu0 0.0
        %650 = vmatpush1.msra.mxu0 0.0
        %651 = vmatprep.subr.mxu0 0.0
        %652 = vmatpush1.msra.mxu0 0.0
        %653 = vmatprep.subr.mxu0 0.0
        %654 = vmatpush1.msra.mxu0 0.0
        %655 = vmatprep.subr.mxu0 0.0
        %656 = vmatpush1.msra.mxu0 0.0
        %657 = vmatprep.subr.mxu0 0.0
        %658 = vmatpush1.msra.mxu0 0.0
        %659 = vmatprep.subr.mxu0 0.0
        %660 = vmatpush1.msra.mxu0 0.0
        %661 = vmatprep.subr.mxu0 0.0
        %662 = vmatpush1.msra.mxu0 0.0
        %663 = vmatprep.subr.mxu0 0.0
        %664 = vmatpush1.msra.mxu0 0.0
        %665 = vmatprep.subr.mxu0 0.0
        %666 = vmatpush1.msra.mxu0 0.0
        %667 = vmatprep.subr.mxu0 0.0
        %668 = vmatpush1.msra.mxu0 0.0
        %669 = vmatprep.subr.mxu0 0.0
        %670 = vmatpush1.msra.mxu0 0.0
        %671 = vmatprep.subr.mxu0 0.0
        %672 = vmatpush1.msra.mxu0 0.0
        %673 = vmatprep.mubr.f32.mxu0 0.0
        %674 = vmatmul.mubr.f32.gmra.mrb[0].mxu0 %v607
        %v675 = vpop.f32.mrb[0].mxu0
        %v676 = vadd.f32 0.0, %v675
        %v677 = vpop.f32.mrb[0].mxu0
        %678 = vdwg.mxu0
        %v679 = vmul.f32 %v530, 0.35355338
        %vm680 = vcmask 64512
        %v682 = vsel %vm680, %v679, 0
        %v685 = vsel %vm680, %v603, 0
        %687 = vmatprep.subr.mxu0 0.0
        %688 = vmatpush1.xpose.msra.mxu0 %v685
        %689 = vmatprep.subr.mxu0 0.0
        %690 = vmatpush1.xpose.msra.mxu0 0.0
        %691 = vmatprep.subr.mxu0 0.0
        %692 = vmatpush1.xpose.msra.mxu0 0.0
        %693 = vmatprep.subr.mxu0 0.0
        %694 = vmatpush1.xpose.msra.mxu0 0.0
        %695 = vmatprep.subr.mxu0 0.0
        %696 = vmatpush1.xpose.msra.mxu0 0.0
        %697 = vmatprep.subr.mxu0 0.0
        %698 = vmatpush1.xpose.msra.mxu0 0.0
        %699 = vmatprep.subr.mxu0 0.0
        %700 = vmatpush1.xpose.msra.mxu0 0.0
        %701 = vmatprep.subr.mxu0 0.0
        %702 = vmatpush1.xpose.msra.mxu0 0.0
        %703 = vmatprep.subr.mxu0 0.0
        %704 = vmatpush1.xpose.msra.mxu0 0.0
        %705 = vmatprep.subr.mxu0 0.0
        %706 = vmatpush1.xpose.msra.mxu0 0.0
        %707 = vmatprep.subr.mxu0 0.0
        %708 = vmatpush1.xpose.msra.mxu0 0.0
        %709 = vmatprep.subr.mxu0 0.0
        %710 = vmatpush1.xpose.msra.mxu0 0.0
        %711 = vmatprep.subr.mxu0 0.0
        %712 = vmatpush1.xpose.msra.mxu0 0.0
        %713 = vmatprep.subr.mxu0 0.0
        %714 = vmatpush1.xpose.msra.mxu0 0.0
        %715 = vmatprep.subr.mxu0 0.0
        %716 = vmatpush1.xpose.msra.mxu0 0.0
        %717 = vmatprep.subr.mxu0 0.0
        %718 = vmatpush1.xpose.msra.mxu0 0.0
        %719 = vmatprep.subr.mxu0 0.0
        %720 = vmatpush1.xpose.msra.mxu0 0.0
        %721 = vmatprep.subr.mxu0 0.0
        %722 = vmatpush1.xpose.msra.mxu0 0.0
        %723 = vmatprep.subr.mxu0 0.0
        %724 = vmatpush1.xpose.msra.mxu0 0.0
        %725 = vmatprep.subr.mxu0 0.0
        %726 = vmatpush1.xpose.msra.mxu0 0.0
        %727 = vmatprep.subr.mxu0 0.0
        %728 = vmatpush1.xpose.msra.mxu0 0.0
        %729 = vmatprep.subr.mxu0 0.0
        %730 = vmatpush1.xpose.msra.mxu0 0.0
        %731 = vmatprep.subr.mxu0 0.0
        %732 = vmatpush1.xpose.msra.mxu0 0.0
        %733 = vmatprep.subr.mxu0 0.0
        %734 = vmatpush1.xpose.msra.mxu0 0.0
        %735 = vmatprep.subr.mxu0 0.0
        %736 = vmatpush1.xpose.msra.mxu0 0.0
        %737 = vmatprep.subr.mxu0 0.0
        %738 = vmatpush1.xpose.msra.mxu0 0.0
        %739 = vmatprep.subr.mxu0 0.0
        %740 = vmatpush1.xpose.msra.mxu0 0.0
        %741 = vmatprep.subr.mxu0 0.0
        %742 = vmatpush1.xpose.msra.mxu0 0.0
        %743 = vmatprep.subr.mxu0 0.0
        %744 = vmatpush1.xpose.msra.mxu0 0.0
        %745 = vmatprep.subr.mxu0 0.0
        %746 = vmatpush1.xpose.msra.mxu0 0.0
        %747 = vmatprep.subr.mxu0 0.0
        %748 = vmatpush1.xpose.msra.mxu0 0.0
        %749 = vmatprep.subr.mxu0 0.0
        %750 = vmatpush1.xpose.msra.mxu0 0.0
        %751 = vmatprep.mubr.f32.mxu0 0.0
        %752 = vmatmul.mubr.f32.gmra.mrb[0].mxu0 %v682
        %v753 = vpop.f32.mrb[0].mxu0
        %v754 = vadd.f32 0.0, %v753
        %v755 = vpop.f32.mrb[0].mxu0
        %756 = vdwg.mxu0
        %v757 = vld [vmem:[%s421] sm:$0x3]
        %vm758 = vnez %v757
        %v759 = vsel %vm758, 16843009, 0
        %v760 = vunpack.c.0.s8 %v759
        %vm761 = vcmp.ne.s32.totalorder %v760, 0
        %v762 = vsel %vm761, -inf, %v754
        %v763 = vsel %vm680, %v762, -inf
        %764 = vmax.xlane.f32.xlu0 %v763
        %v765 = vpop.xlane.xlu0 %764
        %v766 = vsub.f32 %v762, %v765
        %v767 = vmul.f32 %v766, 1.442695
        %v768 = vpow.pop %v767
        %v769 = vsel %vm680, %v768, 0.0
        %770 = vadd.xlane.f32.xlu0 %v769
        %v771 = vpop.xlane.xlu0 %770
        %v772 = vrcp.pop %v771
        %v773 = vmul.f32 %v768, %v772
        %v775 = vsel %vm680, %v773, 0
        %777 = vmatprep.subr.mxu0 0.0
        %778 = vmatpush1.msra.mxu0 %v676
        %779 = vmatprep.subr.mxu0 0.0
        %780 = vmatpush1.msra.mxu0 0.0
        %781 = vmatprep.subr.mxu0 0.0
        %782 = vmatpush1.msra.mxu0 0.0
        %783 = vmatprep.subr.mxu0 0.0
        %784 = vmatpush1.msra.mxu0 0.0
        %785 = vmatprep.subr.mxu0 0.0
        %786 = vmatpush1.msra.mxu0 0.0
        %787 = vmatprep.subr.mxu0 0.0
        %788 = vmatpush1.msra.mxu0 0.0
        %789 = vmatprep.subr.mxu0 0.0
        %790 = vmatpush1.msra.mxu0 0.0
        %791 = vmatprep.subr.mxu0 0.0
        %792 = vmatpush1.msra.mxu0 0.0
        %793 = vmatprep.subr.mxu0 0.0
        %794 = vmatpush1.msra.mxu0 0.0
        %795 = vmatprep.subr.mxu0 0.0
        %796 = vmatpush1.msra.mxu0 0.0
        %797 = vmatprep.subr.mxu0 0.0
        %798 = vmatpush1.msra.mxu0 0.0
        %799 = vmatprep.subr.mxu0 0.0
        %800 = vmatpush1.msra.mxu0 0.0
        %801 = vmatprep.subr.mxu0 0.0
        %802 = vmatpush1.msra.mxu0 0.0
        %803 = vmatprep.subr.mxu0 0.0
        %804 = vmatpush1.msra.mxu0 0.0
        %805 = vmatprep.subr.mxu0 0.0
        %806 = vmatpush1.msra.mxu0 0.0
        %807 = vmatprep.subr.mxu0 0.0
        %808 = vmatpush1.msra.mxu0 0.0
        %809 = vmatprep.subr.mxu0 0.0
        %810 = vmatpush1.msra.mxu0 0.0
        %811 = vmatprep.subr.mxu0 0.0
        %812 = vmatpush1.msra.mxu0 0.0
        %813 = vmatprep.subr.mxu0 0.0
        %814 = vmatpush1.msra.mxu0 0.0
        %815 = vmatprep.subr.mxu0 0.0
        %816 = vmatpush1.msra.mxu0 0.0
        %817 = vmatprep.subr.mxu0 0.0
        %818 = vmatpush1.msra.mxu0 0.0
        %819 = vmatprep.subr.mxu0 0.0
        %820 = vmatpush1.msra.mxu0 0.0
        %821 = vmatprep.subr.mxu0 0.0
        %822 = vmatpush1.msra.mxu0 0.0
        %823 = vmatprep.subr.mxu0 0.0
        %824 = vmatpush1.msra.mxu0 0.0
        %825 = vmatprep.subr.mxu0 0.0
        %826 = vmatpush1.msra.mxu0 0.0
        %827 = vmatprep.subr.mxu0 0.0
        %828 = vmatpush1.msra.mxu0 0.0
        %829 = vmatprep.subr.mxu0 0.0
        %830 = vmatpush1.msra.mxu0 0.0
        %831 = vmatprep.subr.mxu0 0.0
        %832 = vmatpush1.msra.mxu0 0.0
        %833 = vmatprep.subr.mxu0 0.0
        %834 = vmatpush1.msra.mxu0 0.0
        %835 = vmatprep.subr.mxu0 0.0
        %836 = vmatpush1.msra.mxu0 0.0
        %837 = vmatprep.subr.mxu0 0.0
        %838 = vmatpush1.msra.mxu0 0.0
        %839 = vmatprep.subr.mxu0 0.0
        %840 = vmatpush1.msra.mxu0 0.0
        %841 = vmatprep.mubr.f32.mxu0 0.0
        %842 = vmatmul.mubr.f32.gmra.mrb[0].mxu0 %v775
        %v843 = vpop.f32.mrb[0].mxu0
        %v844 = vadd.f32 0.0, %v843
        %v845 = vpop.f32.mrb[0].mxu0
        %846 = vdwg.mxu0
        %v848 = vsel %vm680, %v844, 0
        %850 = vmatprep.subr.mxu0 0.0
        %851 = vmatpush1.msra.mxu0 %v458
        %852 = vmatprep.subr.mxu0 0.0
        %853 = vmatpush1.msra.mxu0 0.0
        %854 = vmatprep.subr.mxu0 0.0
        %855 = vmatpush1.msra.mxu0 0.0
        %856 = vmatprep.subr.mxu0 0.0
        %857 = vmatpush1.msra.mxu0 0.0
        %858 = vmatprep.subr.mxu0 0.0
        %859 = vmatpush1.msra.mxu0 0.0
        %860 = vmatprep.subr.mxu0 0.0
        %861 = vmatpush1.msra.mxu0 0.0
        %862 = vmatprep.subr.mxu0 0.0
        %863 = vmatpush1.msra.mxu0 0.0
        %864 = vmatprep.subr.mxu0 0.0
        %865 = vmatpush1.msra.mxu0 0.0
        %866 = vmatprep.subr.mxu0 0.0
        %867 = vmatpush1.msra.mxu0 0.0
        %868 = vmatprep.subr.mxu0 0.0
        %869 = vmatpush1.msra.mxu0 0.0
        %870 = vmatprep.subr.mxu0 0.0
        %871 = vmatpush1.msra.mxu0 0.0
        %872 = vmatprep.subr.mxu0 0.0
        %873 = vmatpush1.msra.mxu0 0.0
        %874 = vmatprep.subr.mxu0 0.0
        %875 = vmatpush1.msra.mxu0 0.0
        %876 = vmatprep.subr.mxu0 0.0
        %877 = vmatpush1.msra.mxu0 0.0
        %878 = vmatprep.subr.mxu0 0.0
        %879 = vmatpush1.msra.mxu0 0.0
        %880 = vmatprep.subr.mxu0 0.0
        %881 = vmatpush1.msra.mxu0 0.0
        %882 = vmatprep.subr.mxu0 0.0
        %883 = vmatpush1.msra.mxu0 0.0
        %884 = vmatprep.subr.mxu0 0.0
        %885 = vmatpush1.msra.mxu0 0.0
        %886 = vmatprep.subr.mxu0 0.0
        %887 = vmatpush1.msra.mxu0 0.0
        %888 = vmatprep.subr.mxu0 0.0
        %889 = vmatpush1.msra.mxu0 0.0
        %890 = vmatprep.subr.mxu0 0.0
        %891 = vmatpush1.msra.mxu0 0.0
        %892 = vmatprep.subr.mxu0 0.0
        %893 = vmatpush1.msra.mxu0 0.0
        %894 = vmatprep.subr.mxu0 0.0
        %895 = vmatpush1.msra.mxu0 0.0
        %896 = vmatprep.subr.mxu0 0.0
        %897 = vmatpush1.msra.mxu0 0.0
        %898 = vmatprep.subr.mxu0 0.0
        %899 = vmatpush1.msra.mxu0 0.0
        %900 = vmatprep.subr.mxu0 0.0
        %901 = vmatpush1.msra.mxu0 0.0
        %902 = vmatprep.subr.mxu0 0.0
        %903 = vmatpush1.msra.mxu0 0.0
        %904 = vmatprep.subr.mxu0 0.0
        %905 = vmatpush1.msra.mxu0 0.0
        %906 = vmatprep.subr.mxu0 0.0
        %907 = vmatpush1.msra.mxu0 0.0
        %908 = vmatprep.subr.mxu0 0.0
        %909 = vmatpush1.msra.mxu0 0.0
        %910 = vmatprep.subr.mxu0 0.0
        %911 = vmatpush1.msra.mxu0 0.0
        %912 = vmatprep.subr.mxu0 0.0
        %913 = vmatpush1.msra.mxu0 0.0
        %914 = vmatprep.mubr.f32.mxu0 0.0
        %915 = vmatmul.mubr.f32.gmra.mrb[0].mxu0 %v848
        %v916 = vpop.f32.mrb[0].mxu0
        %v917 = vadd.f32 0.0, %v916
        %v918 = vpop.f32.mrb[0].mxu0
        %919 = vdwg.mxu0
        %p920 = scmp.eq.s32.totalorder %s27, 0
        // Predicated region
        $region53: #{tpu_custom_call.1} parent=51 // pred_check
          %p921 = pneg %p920
        $region54: #{tpu_custom_call.1} parent=51 // pred_check_branch
          %923 = sbr.rel (%p921) target = $region56
        $region55: #{tpu_custom_call.1} parent=51 // pred_region
          %924 = vst.msk [vmem:[#allocation2] sm:$0xff] %vm459, 0.0
        $region56: #{tpu_custom_call.1} parent=51 // pred_fallthru
          _
        %v925 = vld [vmem:[#allocation2] sm:$0xff]
        %v926 = vadd.f32 %v925, %v917
        %927 = vst.msk [vmem:[#allocation2] sm:$0xff] %vm459, %v926
        %p928 = scmp.eq.s32.totalorder %s27, 3
        // Predicated region
        $region57: #{tpu_custom_call.1} parent=51 // pred_check
          %p929 = pneg %p928
        $region58: #{tpu_custom_call.1} parent=51 // pred_check_branch
          %931 = sbr.rel (%p929) target = $region60
        $region59: #{tpu_custom_call.1} parent=51 // pred_region
          %v932 = vld [vmem:[#allocation2] sm:$0xff]
          %933 = vst.msk [vmem:[%s405] sm:$0xff] %vm459, %v932
        $region60: #{tpu_custom_call.1} parent=51 // pred_fallthru
          _
        %s934 = sand.u32 %s250, 1
        %s935 = scalar_lea.sflag [#allocation4], %s934
        %s936 = sand.u32 %s250, 1
        %s937 = smul.addr %s936, 8
        %s938 = scalar_lea.vmem [#allocation3], %s937
        // Predicated region
        $region61: #{tpu_custom_call.1} parent=51 // pred_check
          %p939 = pneg %p260
        $region62: #{tpu_custom_call.1} parent=51 // pred_check_branch
          %941 = sbr.rel (%p939) target = $region64
        $region63: #{tpu_custom_call.1} parent=51 // pred_region
          %s943 = ssub.s32 128, 128
          %944 = vsyncadd %s935, %s943
          %s945 = smul.addr %s26, 128
          %s946 = scalar_lea.hbm %s8, %s945
          %s948 = sshll.u32 %s938, 4
          %s949 = int_to_ptr.vmem [resolvable:$true] %s948
          %951 = dma.vmem_to_hbm [thread:$0]  %s949, 128, %s946, %s935
        $region64: #{tpu_custom_call.1} parent=51 // pred_fallthru
          _
      $region52: #{tpu_custom_call.1} parent=5 // pred_fallthru
        _
      %p952 = scmp.le.s32.totalorder 2, %s17
      // Predicated region
      $region65: #{tpu_custom_call.1} parent=5 // pred_check
        %p953 = pneg %p952
      $region66: #{tpu_custom_call.1} parent=5 // pred_check_branch
        %955 = sbr.rel (%p953) target = $region68
      $region67: #{tpu_custom_call.1} parent=5 // pred_region
        %s956 = ssub.s32 %s17, 2
        // Predicated region
        $region69: #{tpu_custom_call.1} parent=67 // pred_check
          %p957 = pneg %p266
        $region70: #{tpu_custom_call.1} parent=67 // pred_check_branch
          %959 = sbr.rel (%p957) target = $region72
        $region71: #{tpu_custom_call.1} parent=67 // pred_region
          %s960 = sand.u32 %s251, 1
          %s961 = scalar_lea.sflag [#allocation4], %s960
          %s962 = sand.u32 %s251, 1
          %s963 = smul.addr %s962, 8
          %s964 = scalar_lea.vmem [#allocation3], %s963
          %965 = dma.done %s961, 128
        $region72: #{tpu_custom_call.1} parent=67 // pred_fallthru
          _
      $region68: #{tpu_custom_call.1} parent=5 // pred_fallthru
        _
    $region6: #{tpu_custom_call.1} parent=1 // loop_footer
      %s21 = sadd.s32 1, %s17
    $region7: #{tpu_custom_call.1} parent=1 // loop_footer_branch
      %16 = sbr.rel target = $region3
    $region8: #{tpu_custom_call.1} parent=1 // loop_exit
      _
    %966 = vsyncpa [#allocation4], 1
    %s967 = scalar_lea.sflag [#allocation4], 1
    %968 = vsyncpa %s967, 1

</llo_original>
